<compile_context>
chip_gen: v7x
topology: tpu7x:2x2x1
jax: 0.10.0
libtpu: 0.0.40
codegen_flags: <defaults>
</compile_context>

<pallas_src>
import jax
import jax.numpy as jnp
from jax.experimental import pallas as pl
from jax.experimental.pallas import tpu as pltpu

N_IN, N_HID, N_CLS = 4, 50, 3


def _round_up(n, m):
    return ((n + m - 1) // m) * m


def classifier_kernel(xT_ref, w1_ref, b1_ref, w2_ref, b2_ref, oT_ref):
    # x^T tile: (4, TB) -- batch on the lane axis, so both matmuls put the
    # large batch dimension on the MXU free axis and output stores are
    # lane-dense.
    xT = xT_ref[...]

    # fc1 + ReLU: (50, 4) @ (4, TB) -> (50, TB); bias (50, 1) broadcasts over lanes.
    h = jnp.dot(w1_ref[...], xT, preferred_element_type=jnp.float32)
    h = jnp.maximum(h + b1_ref[...], 0.0)
    if w2_ref.dtype == jnp.dtype(jnp.bfloat16):
        # Low-precision mode: halve the dominant (50, TB) VMEM slab and run
        # fc2 at native bf16 MXU rate (matters most inside v7x's 64 MiB/TC).
        h = h.astype(jnp.bfloat16)

    # fc2: (3, 50) @ (50, TB) -> (3, TB); bias (3, 1) broadcasts over lanes.
    logits = jnp.dot(w2_ref[...], h, preferred_element_type=jnp.float32) + b2_ref[...]

    # Softmax over the 3 class rows (== dim=1 of the original (B, 3) layout).
    # Unrolled max/sum over the 3 sublane rows stays on the VPU; exp goes to
    # the EUP.  Exact division for normalization so rows sum to 1 to f32
    # rounding (the approximate reciprocal did not).
    l0 = logits[0:1, :]
    l1 = logits[1:2, :]
    l2 = logits[2:3, :]
    m = jnp.maximum(jnp.maximum(l0, l1), l2)          # (1, TB)
    e = jnp.exp(logits - m)                           # (3, TB)
    denom = e[0:1, :] + e[1:2, :] + e[2:3, :]         # (1, TB)
    oT_ref[...] = (e / denom).astype(oT_ref.dtype)    # lane-dense full-tile store


def classifier_forward_colmajor(xT, w1, b1, w2, b2, *, tb=16384, low_precision=False):
    """Zero-layout-copy path: xT is (4, B), returns probabilities^T as (3, B)."""
    assert xT.shape[0] == N_IN
    B = int(xT.shape[1])

    in_dtype = jnp.bfloat16 if low_precision else jnp.float32
    xT = xT.astype(in_dtype)
    w1c = w1.astype(in_dtype)                              # (50, 4)  torch layout
    w2c = w2.astype(in_dtype)                              # (3, 50)
    b1c = jnp.reshape(b1, (-1, 1)).astype(jnp.float32)     # (50, 1)
    b2c = jnp.reshape(b2, (-1, 1)).astype(jnp.float32)     # (3, 1)

    # ---- batch tile selection -------------------------------------------
    # Big tiles amortize the ~0.35 us per-grid-step overhead; cap at 32768
    # columns (~15 MB working set) so it fits every generation's VMEM, don't
    # exceed the (rounded-up) batch, and keep >=2 grid steps when possible so
    # megacore parts can split the batch across TensorCores.
    tb = max(128, _round_up(min(int(tb), 32768), 128))
    tb = min(tb, _round_up(B, 128))
    if B > 128:
        tb = min(tb, _round_up((B + 1) // 2, 128))
    grid = ((B + tb - 1) // tb,)                            # partial last block, no pad

    # ---- explicit VMEM budget (review: don't rely on the 16/32 MiB default)
    itemsize = jnp.dtype(in_dtype).itemsize
    est_vmem = tb * (
        2 * _round_up(N_IN, 8) * itemsize          # double-buffered x^T blocks
        + 2 * _round_up(N_CLS, 8) * 4              # double-buffered output blocks
        + _round_up(N_HID, 8) * (4 + itemsize)     # h slab (f32 + optional bf16 copy)
        + 4 * _round_up(N_CLS, 8) * 4              # logits / e / temps
    ) + (1 << 20)
    vmem_limit = int(min(64 * 2**20, max(32 * 2**20, 2 * est_vmem)))

    cost = pl.CostEstimate(
        flops=2 * B * (N_IN * N_HID + N_HID * N_CLS),
        transcendentals=3 * B,                              # 3 exps / column
        bytes_accessed=int(
            xT.size * itemsize + N_CLS * B * 4
            + (w1c.size + w2c.size) * itemsize + (b1c.size + b2c.size) * 4
        ),
    )

    outT = pl.pallas_call(
        classifier_kernel,
        out_shape=jax.ShapeDtypeStruct((N_CLS, B), jnp.float32),
        grid_spec=pltpu.PrefetchScalarGridSpec(
            num_scalar_prefetch=0,
            grid=grid,
            in_specs=[
                pl.BlockSpec((N_IN, tb), lambda i: (0, i)),       # x^T batch tile
                pl.BlockSpec((N_HID, N_IN), lambda i: (0, 0)),    # W1 (VMEM-resident)
                pl.BlockSpec((N_HID, 1), lambda i: (0, 0)),       # b1 (VMEM-resident)
                pl.BlockSpec((N_CLS, N_HID), lambda i: (0, 0)),   # W2 (VMEM-resident)
                pl.BlockSpec((N_CLS, 1), lambda i: (0, 0)),       # b2 (VMEM-resident)
            ],
            out_specs=pl.BlockSpec((N_CLS, tb), lambda i: (0, i)),
        ),
        compiler_params=pltpu.CompilerParams(
            dimension_semantics=("parallel",),                    # megacore batch split
            vmem_limit_bytes=vmem_limit,
        ),
        cost_estimate=cost,
    )(xT, w1c, b1c, w2c, b2c)
    return outT


def classifier_forward(x, w1, b1, w2, b2, *, tb=16384, low_precision=False):
    """PyTorch-layout contract: x (B, 4) -> softmax probs (B, 3), f32.

    The x.T / out.T below each cost one extra HBM pass; callers chasing the
    HBM roofline should keep activations column-major and call
    classifier_forward_colmajor directly.
    """
    outT = classifier_forward_colmajor(
        x.T, w1, b1, w2, b2, tb=tb, low_precision=low_precision
    )
    return outT.T


def init_params(key):
    """torch.nn.Linear default init: U[-1/sqrt(fan_in), +1/sqrt(fan_in)], torch layout."""
    k1, k2, k3, k4 = jax.random.split(key, 4)
    lim1 = 1.0 / jnp.sqrt(4.0)
    lim2 = 1.0 / jnp.sqrt(50.0)
    w1 = jax.random.uniform(k1, (N_HID, N_IN), jnp.float32, -lim1, lim1)
    b1 = jax.random.uniform(k2, (N_HID,), jnp.float32, -lim1, lim1)
    w2 = jax.random.uniform(k3, (N_CLS, N_HID), jnp.float32, -lim2, lim2)
    b2 = jax.random.uniform(k4, (N_CLS,), jnp.float32, -lim2, lim2)
    return w1, b1, w2, b2


def reference_forward(x, w1, b1, w2, b2):
    hp = jax.lax.Precision.HIGHEST
    h = jnp.maximum(jnp.dot(x, w1.T, precision=hp) + b1, 0.0)
    logits = jnp.dot(h, w2.T, precision=hp) + b2
    return jax.nn.softmax(logits, axis=1)


if __name__ == "__main__":
    key = jax.random.PRNGKey(0)
    kx, kp = jax.random.split(key)
    w1, b1, w2, b2 = init_params(kp)

    # Small batch: single (partial) 128-wide tile.
    B = 8
    x = jax.random.normal(kx, (B, N_IN), jnp.float32)
    out = jax.block_until_ready(classifier_forward(x, w1, b1, w2, b2))
    ref = reference_forward(x, w1, b1, w2, b2)
    assert out.shape == (B, N_CLS)
    # 1e-2 tolerance covers the MXU's default matmul precision vs. the
    # highest-precision reference; row sums are exact-division accurate.
    assert jnp.allclose(out, ref, atol=1e-2, rtol=1e-2)
    assert jnp.allclose(jnp.sum(out, axis=1), jnp.ones((B,)), atol=2e-3)

    # Ragged batch exercising >=2 grid steps and a partial last block.
    B2 = 300
    x2 = jax.random.normal(kx, (B2, N_IN), jnp.float32)
    out2 = jax.block_until_ready(classifier_forward(x2, w1, b1, w2, b2))
    ref2 = reference_forward(x2, w1, b1, w2, b2)
    assert out2.shape == (B2, N_CLS)
    assert jnp.allclose(out2, ref2, atol=1e-2, rtol=1e-2)
    assert jnp.allclose(jnp.sum(out2, axis=1), jnp.ones((B2,)), atol=2e-3)

    # bf16 HBM-facing path (~2x bandwidth at roofline); looser tolerance for
    # bf16 rounding, row sums still f32-exact.
    out3 = jax.block_until_ready(
        classifier_forward(x2, w1, b1, w2, b2, low_precision=True)
    )
    assert jnp.allclose(out3, ref2, atol=3e-2, rtol=3e-2)
    assert jnp.allclose(jnp.sum(out3, axis=1), jnp.ones((B2,)), atol=2e-3)

    # Zero-layout-copy column-major path.
    out4T = jax.block_until_ready(
        classifier_forward_colmajor(x2.T, w1, b1, w2, b2)
    )
    assert out4T.shape == (N_CLS, B2)
    assert jnp.allclose(out4T.T, ref2, atol=1e-2, rtol=1e-2)

    print("KERNEL_OK")
</pallas_src>

<mosaic_0001>
module attributes {stable_mosaic.version = 11 : i64} {
  func.func @classifier_kernel(%arg0: i32, %arg1: memref<4x128xf32, #tpu.memory_space<vmem>>, %arg2: memref<50x4xf32, #tpu.memory_space<vmem>>, %arg3: memref<50x1xf32, #tpu.memory_space<vmem>>, %arg4: memref<3x50xf32, #tpu.memory_space<vmem>>, %arg5: memref<3x1xf32, #tpu.memory_space<vmem>>, %arg6: memref<3x128xf32, #tpu.memory_space<vmem>>) attributes {dimension_semantics = [#tpu.dimension_semantics<parallel>], iteration_bounds = array<i64: 1>, scalar_prefetch = 0 : i64, scratch_operands = 0 : i64, tpu.core_type = #tpu.core_type<tc>, window_params = [{transform_indices = @transform_0, window_bounds = array<i64: 4, 128>}, {pipeline_mode = #tpu.pipeline_mode<synchronous>, transform_indices = @transform_1, window_bounds = array<i64: 50, 4>}, {pipeline_mode = #tpu.pipeline_mode<synchronous>, transform_indices = @transform_2, window_bounds = array<i64: 50, 1>}, {pipeline_mode = #tpu.pipeline_mode<synchronous>, transform_indices = @transform_3, window_bounds = array<i64: 3, 50>}, {pipeline_mode = #tpu.pipeline_mode<synchronous>, transform_indices = @transform_4, window_bounds = array<i64: 3, 1>}, {transform_indices = @transform_5, window_bounds = array<i64: 3, 128>}]} {
    %c0 = arith.constant 0 : index
    %c0_0 = arith.constant 0 : index
    %0 = vector.load %arg1[%c0, %c0_0] : memref<4x128xf32, #tpu.memory_space<vmem>>, vector<4x128xf32>
    %c0_1 = arith.constant 0 : index
    %c0_2 = arith.constant 0 : index
    %1 = vector.load %arg2[%c0_1, %c0_2] : memref<50x4xf32, #tpu.memory_space<vmem>>, vector<50x4xf32>
    %cst = arith.constant dense<0.000000e+00> : vector<50x128xf32>
    %2 = tpu.matmul %1, %0, %cst {dimension_numbers = #tpu.dot_dimension_numbers<[1], [0], [0], [1], [0, 0, 1, 1], [], []>} : vector<50x4xf32>, vector<4x128xf32>, vector<50x128xf32> -> vector<50x128xf32>
    %c0_3 = arith.constant 0 : index
    %c0_4 = arith.constant 0 : index
    %3 = vector.load %arg3[%c0_3, %c0_4] : memref<50x1xf32, #tpu.memory_space<vmem>>, vector<50x1xf32>
    %4 = vector.broadcast %3 : vector<50x1xf32> to vector<50x128xf32>
    %5 = arith.addf %2, %4 : vector<50x128xf32>
    %cst_5 = arith.constant 0.000000e+00 : f32
    %6 = vector.broadcast %cst_5 : f32 to vector<50x128xf32>
    %7 = arith.maximumf %5, %6 : vector<50x128xf32>
    %c0_6 = arith.constant 0 : index
    %c0_7 = arith.constant 0 : index
    %8 = vector.load %arg4[%c0_6, %c0_7] : memref<3x50xf32, #tpu.memory_space<vmem>>, vector<3x50xf32>
    %cst_8 = arith.constant dense<0.000000e+00> : vector<3x128xf32>
    %9 = tpu.matmul %8, %7, %cst_8 {dimension_numbers = #tpu.dot_dimension_numbers<[1], [0], [0], [1], [0, 0, 1, 1], [], []>} : vector<3x50xf32>, vector<50x128xf32>, vector<3x128xf32> -> vector<3x128xf32>
    %c0_9 = arith.constant 0 : index
    %c0_10 = arith.constant 0 : index
    %10 = vector.load %arg5[%c0_9, %c0_10] : memref<3x1xf32, #tpu.memory_space<vmem>>, vector<3x1xf32>
    %11 = vector.broadcast %10 : vector<3x1xf32> to vector<3x128xf32>
    %12 = arith.addf %9, %11 : vector<3x128xf32>
    %13 = vector.extract_strided_slice %12 {offsets = [0, 0], sizes = [1, 128], strides = [1, 1]} : vector<3x128xf32> to vector<1x128xf32>
    %14 = vector.extract_strided_slice %12 {offsets = [1, 0], sizes = [1, 128], strides = [1, 1]} : vector<3x128xf32> to vector<1x128xf32>
    %15 = vector.extract_strided_slice %12 {offsets = [2, 0], sizes = [1, 128], strides = [1, 1]} : vector<3x128xf32> to vector<1x128xf32>
    %16 = arith.maximumf %13, %14 : vector<1x128xf32>
    %17 = arith.maximumf %16, %15 : vector<1x128xf32>
    %18 = vector.broadcast %17 : vector<1x128xf32> to vector<3x128xf32>
    %19 = arith.subf %12, %18 : vector<3x128xf32>
    %20 = math.exp %19 : vector<3x128xf32>
    %21 = vector.extract_strided_slice %20 {offsets = [0, 0], sizes = [1, 128], strides = [1, 1]} : vector<3x128xf32> to vector<1x128xf32>
    %22 = vector.extract_strided_slice %20 {offsets = [1, 0], sizes = [1, 128], strides = [1, 1]} : vector<3x128xf32> to vector<1x128xf32>
    %23 = arith.addf %21, %22 : vector<1x128xf32>
    %24 = vector.extract_strided_slice %20 {offsets = [2, 0], sizes = [1, 128], strides = [1, 1]} : vector<3x128xf32> to vector<1x128xf32>
    %25 = arith.addf %23, %24 : vector<1x128xf32>
    %26 = vector.broadcast %25 : vector<1x128xf32> to vector<3x128xf32>
    %27 = arith.divf %20, %26 : vector<3x128xf32>
    %c0_11 = arith.constant 0 : index
    %c0_12 = arith.constant 0 : index
    %28 = vector.load %arg6[%c0_11, %c0_12] : memref<3x128xf32, #tpu.memory_space<vmem>>, vector<3x128xf32>
    tpu.vector_store %arg6[%c0_11, %c0_12], %27 {strides = array<i32>} : memref<3x128xf32, #tpu.memory_space<vmem>>, vector<3x128xf32>,
    return
  }
  func.func @transform_0(%arg0: i32) -> (i32, i32) {
    %c0_i32 = arith.constant 0 : i32
    %c0_i32_0 = arith.constant 0 : i32
    return %c0_i32, %arg0 : i32, i32
  }
  func.func @transform_1(%arg0: i32) -> (i32, i32) {
    %c0_i32 = arith.constant 0 : i32
    %c0_i32_0 = arith.constant 0 : i32
    %c0_i32_1 = arith.constant 0 : i32
    return %c0_i32, %c0_i32_0 : i32, i32
  }
  func.func @transform_2(%arg0: i32) -> (i32, i32) {
    %c0_i32 = arith.constant 0 : i32
    %c0_i32_0 = arith.constant 0 : i32
    %c0_i32_1 = arith.constant 0 : i32
    return %c0_i32, %c0_i32_0 : i32, i32
  }
  func.func @transform_3(%arg0: i32) -> (i32, i32) {
    %c0_i32 = arith.constant 0 : i32
    %c0_i32_0 = arith.constant 0 : i32
    %c0_i32_1 = arith.constant 0 : i32
    return %c0_i32, %c0_i32_0 : i32, i32
  }
  func.func @transform_4(%arg0: i32) -> (i32, i32) {
    %c0_i32 = arith.constant 0 : i32
    %c0_i32_0 = arith.constant 0 : i32
    %c0_i32_1 = arith.constant 0 : i32
    return %c0_i32, %c0_i32_0 : i32, i32
  }
  func.func @transform_5(%arg0: i32) -> (i32, i32) {
    %c0_i32 = arith.constant 0 : i32
    %c0_i32_0 = arith.constant 0 : i32
    return %c0_i32, %arg0 : i32, i32
  }
}

</mosaic_0001>

<llo_original>
// kernel: tpu_custom_call.1
$region0: #{tpu_custom_call.1}
  #allocation0 [shape = 'u32[]', space=smem, size = 0x4, offset = 0x4, fixed_abs, tag = 'smem constant byte address 0x4 - core index']
  #allocation1 [shape = 'u32[144,128]{1,0:T(1,128)}', space=vmem, size = 0x12000, scoped, tag = 'internal scratch']
  %s0 = inlined_call_operand.vmem [shape: f32[4,8], index: 0, kind: input, shape index: {}]
  %s1 = inlined_call_operand.vmem [shape: f32[50,4], index: 1, kind: input, shape index: {}]
  %s2 = inlined_call_operand.vmem [shape: f32[50,1], index: 2, kind: input, shape index: {}]
  %s3 = inlined_call_operand.vmem [shape: f32[3,50], index: 3, kind: input, shape index: {}]
  %s4 = inlined_call_operand.vmem [shape: f32[3,1], index: 4, kind: input, shape index: {}]
  %s5 = inlined_call_operand.hbm [shape: f32[3,8], index: 5, kind: output, shape index: {}]
  %s6 = sld [smem:[#allocation0]]
  $region30: #{tpu_custom_call.1} parent=0
    _
  %s8 = ssub.s32 1, %s6
  %s9 = scalar_select 0, %s8, %s6
  $region1: #{tpu_custom_call.1} parent=0
    #allocation2 [shape = 'u8[2048]{0}', space=vmem, size = 0x800, scoped, tag = 'output window, operand 0, single buffered']
    #allocation3 [shape = 's32[1]{0}', space=sflag, size = 0x4, scoped, tag = 'scoped memory for tpu_custom_call.1']
    %10 = vsyncpa [#allocation3], 0
    // Predicated region
    $region2: #{tpu_custom_call.1} parent=1 // pred_check
      _
    $region3: #{tpu_custom_call.1} parent=1 // pred_check_branch
      %12 = sbr.rel (0) target = $region5
    $region4: #{tpu_custom_call.1} parent=1 // pred_region
      _
    $region5: #{tpu_custom_call.1} parent=1 // pred_fallthru
      _
    // Predicated region
    $region6: #{tpu_custom_call.1} parent=1 // pred_check
      _
    $region7: #{tpu_custom_call.1} parent=1 // pred_check_branch
      %14 = sbr.rel (0) target = $region9
    $region8: #{tpu_custom_call.1} parent=1 // pred_region
      _
    $region9: #{tpu_custom_call.1} parent=1 // pred_fallthru
      _
    // Predicated region
    $region10: #{tpu_custom_call.1} parent=1 // pred_check
      _
    $region11: #{tpu_custom_call.1} parent=1 // pred_check_branch
      %16 = sbr.rel (0) target = $region13
    $region12: #{tpu_custom_call.1} parent=1 // pred_region
      _
    $region13: #{tpu_custom_call.1} parent=1 // pred_fallthru
      _
    // Predicated region
    $region14: #{tpu_custom_call.1} parent=1 // pred_check
      _
    $region15: #{tpu_custom_call.1} parent=1 // pred_check_branch
      %18 = sbr.rel (0) target = $region17
    $region16: #{tpu_custom_call.1} parent=1 // pred_region
      _
    $region17: #{tpu_custom_call.1} parent=1 // pred_fallthru
      _
    // Predicated region
    $region18: #{tpu_custom_call.1} parent=1 // pred_check
      _
    $region19: #{tpu_custom_call.1} parent=1 // pred_check_branch
      %20 = sbr.rel (0) target = $region21
    $region20: #{tpu_custom_call.1} parent=1 // pred_region
      _
    $region21: #{tpu_custom_call.1} parent=1 // pred_fallthru
      _
    %v21 = vld [vmem:[%s0] sm:$0xf]
    %v22 = vld [vmem:[%s1] sm:$0xff]
    %v23 = vld [vmem:[%s1 + $0x8] sm:$0xff]
    %v24 = vld [vmem:[%s1 + $0x10] sm:$0xff]
    %v25 = vld [vmem:[%s1 + $0x18] sm:$0xff]
    %v26 = vld [vmem:[%s1 + $0x20] sm:$0xff]
    %v27 = vld [vmem:[%s1 + $0x28] sm:$0xff]
    %v28 = vld [vmem:[%s1 + $0x30] sm:$0x3]
    %v29 = vld [vmem:[%s2] sm:$0xff]
    %v30 = vld [vmem:[%s2 + $0x8] sm:$0xff]
    %v31 = vld [vmem:[%s2 + $0x10] sm:$0xff]
    %v32 = vld [vmem:[%s2 + $0x18] sm:$0xff]
    %v33 = vld [vmem:[%s2 + $0x20] sm:$0xff]
    %v34 = vld [vmem:[%s2 + $0x28] sm:$0xff]
    %v35 = vld [vmem:[%s2 + $0x30] sm:$0x3]
    %37 = vset.pattern.permute.xlu0 0
    %38 = vperm.xlu0 %37, %v29
    %v39 = vpop.permute.xlu0 %38
    %42 = vset.pattern.permute.xlu0 0
    %43 = vperm.xlu0 %42, %v30
    %v44 = vpop.permute.xlu0 %43
    %47 = vset.pattern.permute.xlu0 0
    %48 = vperm.xlu0 %47, %v31
    %v49 = vpop.permute.xlu0 %48
    %52 = vset.pattern.permute.xlu0 0
    %53 = vperm.xlu0 %52, %v32
    %v54 = vpop.permute.xlu0 %53
    %57 = vset.pattern.permute.xlu0 0
    %58 = vperm.xlu0 %57, %v33
    %v59 = vpop.permute.xlu0 %58
    %62 = vset.pattern.permute.xlu0 0
    %63 = vperm.xlu0 %62, %v34
    %v64 = vpop.permute.xlu0 %63
    %67 = vset.pattern.permute.xlu0 0
    %68 = vperm.xlu0 %67, %v35
    %v69 = vpop.permute.xlu0 %68
    %vm71 = vcmask 31744
    %v73 = vsel %vm71, %v22, 0
    %v76 = vsel %vm71, %v23, 0
    %v79 = vsel %vm71, %v24, 0
    %v82 = vsel %vm71, %v25, 0
    %v85 = vsel %vm71, %v26, 0
    %v88 = vsel %vm71, %v27, 0
    %v91 = vsel %vm71, %v28, 0
    %vm93 = vcmask 1043456
    %v95 = vsel %vm93, %v21, 0
    %97 = vmatprep.subr.mxu0 0.0
    %98 = vmatpush1.msra.mxu0 %v95
    %99 = vmatprep.subr.mxu0 0.0
    %100 = vmatpush1.msra.mxu0 0.0
    %101 = vmatprep.subr.mxu0 0.0
    %102 = vmatpush1.msra.mxu0 0.0
    %103 = vmatprep.subr.mxu0 0.0
    %104 = vmatpush1.msra.mxu0 0.0
    %105 = vmatprep.subr.mxu0 0.0
    %106 = vmatpush1.msra.mxu0 0.0
    %107 = vmatprep.subr.mxu0 0.0
    %108 = vmatpush1.msra.mxu0 0.0
    %109 = vmatprep.subr.mxu0 0.0
    %110 = vmatpush1.msra.mxu0 0.0
    %111 = vmatprep.subr.mxu0 0.0
    %112 = vmatpush1.msra.mxu0 0.0
    %113 = vmatprep.subr.mxu0 0.0
    %114 = vmatpush1.msra.mxu0 0.0
    %115 = vmatprep.subr.mxu0 0.0
    %116 = vmatpush1.msra.mxu0 0.0
    %117 = vmatprep.subr.mxu0 0.0
    %118 = vmatpush1.msra.mxu0 0.0
    %119 = vmatprep.subr.mxu0 0.0
    %120 = vmatpush1.msra.mxu0 0.0
    %121 = vmatprep.subr.mxu0 0.0
    %122 = vmatpush1.msra.mxu0 0.0
    %123 = vmatprep.subr.mxu0 0.0
    %124 = vmatpush1.msra.mxu0 0.0
    %125 = vmatprep.subr.mxu0 0.0
    %126 = vmatpush1.msra.mxu0 0.0
    %127 = vmatprep.subr.mxu0 0.0
    %128 = vmatpush1.msra.mxu0 0.0
    %129 = vmatprep.subr.mxu0 0.0
    %130 = vmatpush1.msra.mxu0 0.0
    %131 = vmatprep.subr.mxu0 0.0
    %132 = vmatpush1.msra.mxu0 0.0
    %133 = vmatprep.subr.mxu0 0.0
    %134 = vmatpush1.msra.mxu0 0.0
    %135 = vmatprep.subr.mxu0 0.0
    %136 = vmatpush1.msra.mxu0 0.0
    %137 = vmatprep.subr.mxu0 0.0
    %138 = vmatpush1.msra.mxu0 0.0
    %139 = vmatprep.subr.mxu0 0.0
    %140 = vmatpush1.msra.mxu0 0.0
    %141 = vmatprep.subr.mxu0 0.0
    %142 = vmatpush1.msra.mxu0 0.0
    %143 = vmatprep.subr.mxu0 0.0
    %144 = vmatpush1.msra.mxu0 0.0
    %145 = vmatprep.subr.mxu0 0.0
    %146 = vmatpush1.msra.mxu0 0.0
    %147 = vmatprep.subr.mxu0 0.0
    %148 = vmatpush1.msra.mxu0 0.0
    %149 = vmatprep.subr.mxu0 0.0
    %150 = vmatpush1.msra.mxu0 0.0
    %151 = vmatprep.subr.mxu0 0.0
    %152 = vmatpush1.msra.mxu0 0.0
    %153 = vmatprep.subr.mxu0 0.0
    %154 = vmatpush1.msra.mxu0 0.0
    %155 = vmatprep.subr.mxu0 0.0
    %156 = vmatpush1.msra.mxu0 0.0
    %157 = vmatprep.subr.mxu0 0.0
    %158 = vmatpush1.msra.mxu0 0.0
    %159 = vmatprep.subr.mxu0 0.0
    %160 = vmatpush1.msra.mxu0 0.0
    %161 = vmatprep.mubr.f32.mxu0 0.0
    %162 = vmatmul.mubr.f32.gmra.mrb[0].mxu0 %v73
    %v163 = vpop.f32.mrb[0].mxu0
    %v164 = vadd.f32 %v39, %v163
    %v165 = vpop.f32.mrb[0].mxu0
    %166 = vmatprep.mubr.f32.mxu0 0.0
    %167 = vmatmul.mubr.f32.gmra.mrb[0].mxu0 %v76
    %v168 = vpop.f32.mrb[0].mxu0
    %v169 = vadd.f32 %v44, %v168
    %v170 = vpop.f32.mrb[0].mxu0
    %171 = vmatprep.mubr.f32.mxu0 0.0
    %172 = vmatmul.mubr.f32.gmra.mrb[0].mxu0 %v79
    %v173 = vpop.f32.mrb[0].mxu0
    %v174 = vadd.f32 %v49, %v173
    %v175 = vpop.f32.mrb[0].mxu0
    %176 = vmatprep.mubr.f32.mxu0 0.0
    %177 = vmatmul.mubr.f32.gmra.mrb[0].mxu0 %v82
    %v178 = vpop.f32.mrb[0].mxu0
    %v179 = vadd.f32 %v54, %v178
    %v180 = vpop.f32.mrb[0].mxu0
    %181 = vmatprep.mubr.f32.mxu0 0.0
    %182 = vmatmul.mubr.f32.gmra.mrb[0].mxu0 %v85
    %v183 = vpop.f32.mrb[0].mxu0
    %v184 = vadd.f32 %v59, %v183
    %v185 = vpop.f32.mrb[0].mxu0
    %186 = vmatprep.mubr.f32.mxu0 0.0
    %187 = vmatmul.mubr.f32.gmra.mrb[0].mxu0 %v88
    %v188 = vpop.f32.mrb[0].mxu0
    %v189 = vadd.f32 %v64, %v188
    %v190 = vpop.f32.mrb[0].mxu0
    %191 = vmatprep.mubr.f32.mxu0 0.0
    %192 = vmatmul.mubr.f32.gmra.mrb[0].mxu0 %v91
    %v193 = vpop.f32.mrb[0].mxu0
    %v194 = vadd.f32 %v69, %v193
    %v195 = vpop.f32.mrb[0].mxu0
    %196 = vdwg.mxu0
    %v197 = vmax.f32 %v164, 0.0
    %v198 = vmax.f32 %v169, 0.0
    %v199 = vmax.f32 %v174, 0.0
    %v200 = vmax.f32 %v179, 0.0
    %v201 = vmax.f32 %v184, 0.0
    %v202 = vmax.f32 %v189, 0.0
    %v203 = vmax.f32 %v194, 0.0
    %v204 = vld [vmem:[%s3] sm:$0x7]
    %v205 = vld [vmem:[%s4] sm:$0x7]
    %207 = vset.pattern.permute.xlu0 0
    %208 = vperm.xlu0 %207, %v205
    %v209 = vpop.permute.xlu0 %208
    %vm211 = vcmask 408576
    %v213 = vsel %vm211, %v204, 0
    %vm215 = vcmask 1041408
    %v217 = vsel %vm215, %v203, 0
    %219 = vmatprep.subr.mxu0 0.0
    %220 = vmatpush1.msra.mxu0 %v197
    %221 = vmatprep.subr.mxu0 0.0
    %222 = vmatpush1.msra.mxu0 %v198
    %223 = vmatprep.subr.mxu0 0.0
    %224 = vmatpush1.msra.mxu0 %v199
    %225 = vmatprep.subr.mxu0 0.0
    %226 = vmatpush1.msra.mxu0 %v200
    %227 = vmatprep.subr.mxu0 0.0
    %228 = vmatpush1.msra.mxu0 %v201
    %229 = vmatprep.subr.mxu0 0.0
    %230 = vmatpush1.msra.mxu0 %v202
    %231 = vmatprep.subr.mxu0 0.0
    %232 = vmatpush1.msra.mxu0 %v217
    %233 = vmatprep.subr.mxu0 0.0
    %234 = vmatpush1.msra.mxu0 0.0
    %235 = vmatprep.subr.mxu0 0.0
    %236 = vmatpush1.msra.mxu0 0.0
    %237 = vmatprep.subr.mxu0 0.0
    %238 = vmatpush1.msra.mxu0 0.0
    %239 = vmatprep.subr.mxu0 0.0
    %240 = vmatpush1.msra.mxu0 0.0
    %241 = vmatprep.subr.mxu0 0.0
    %242 = vmatpush1.msra.mxu0 0.0
    %243 = vmatprep.subr.mxu0 0.0
    %244 = vmatpush1.msra.mxu0 0.0
    %245 = vmatprep.subr.mxu0 0.0
    %246 = vmatpush1.msra.mxu0 0.0
    %247 = vmatprep.subr.mxu0 0.0
    %248 = vmatpush1.msra.mxu0 0.0
    %249 = vmatprep.subr.mxu0 0.0
    %250 = vmatpush1.msra.mxu0 0.0
    %251 = vmatprep.subr.mxu0 0.0
    %252 = vmatpush1.msra.mxu0 0.0
    %253 = vmatprep.subr.mxu0 0.0
    %254 = vmatpush1.msra.mxu0 0.0
    %255 = vmatprep.subr.mxu0 0.0
    %256 = vmatpush1.msra.mxu0 0.0
    %257 = vmatprep.subr.mxu0 0.0
    %258 = vmatpush1.msra.mxu0 0.0
    %259 = vmatprep.subr.mxu0 0.0
    %260 = vmatpush1.msra.mxu0 0.0
    %261 = vmatprep.subr.mxu0 0.0
    %262 = vmatpush1.msra.mxu0 0.0
    %263 = vmatprep.subr.mxu0 0.0
    %264 = vmatpush1.msra.mxu0 0.0
    %265 = vmatprep.subr.mxu0 0.0
    %266 = vmatpush1.msra.mxu0 0.0
    %267 = vmatprep.subr.mxu0 0.0
    %268 = vmatpush1.msra.mxu0 0.0
    %269 = vmatprep.subr.mxu0 0.0
    %270 = vmatpush1.msra.mxu0 0.0
    %271 = vmatprep.subr.mxu0 0.0
    %272 = vmatpush1.msra.mxu0 0.0
    %273 = vmatprep.subr.mxu0 0.0
    %274 = vmatpush1.msra.mxu0 0.0
    %275 = vmatprep.subr.mxu0 0.0
    %276 = vmatpush1.msra.mxu0 0.0
    %277 = vmatprep.subr.mxu0 0.0
    %278 = vmatpush1.msra.mxu0 0.0
    %279 = vmatprep.subr.mxu0 0.0
    %280 = vmatpush1.msra.mxu0 0.0
    %281 = vmatprep.subr.mxu0 0.0
    %282 = vmatpush1.msra.mxu0 0.0
    %283 = vmatprep.mubr.f32.mxu0 0.0
    %284 = vmatmul.mubr.f32.gmra.mrb[0].mxu0 %v213
    %v285 = vpop.f32.mrb[0].mxu0
    %v286 = vadd.f32 %v209, %v285
    %v287 = vpop.f32.mrb[0].mxu0
    %288 = vdwg.mxu0
    %v290 = vrot.slane %v286, 1
    %v292 = vmax.f32 %v286, %v290
    %v293 = vrot.slane %v286, 2
    %v295 = vmax.f32 %v292, %v293
    %v296 = vlaneseq
    %v297 = vshrl.u32 %v296, 7
    %v298 = vsub.s32 0, %v297
    %v299 = vrot.slane %v295, %v298
    %v300 = vsub.f32 %v286, %v299
    %v301 = vmul.f32 %v300, 1.442695
    %v302 = vpow.pop %v301
    %v304 = vrot.slane %v302, 1
    %v306 = vadd.f32 %v302, %v304
    %v307 = vrot.slane %v302, 2
    %v309 = vadd.f32 %v306, %v307
    %v310 = vlaneseq
    %v311 = vshrl.u32 %v310, 7
    %v312 = vsub.s32 0, %v311
    %v313 = vrot.slane %v309, %v312
    %v314 = vrcp.pop %v313
    %v315 = vmul.f32 %v302, %v314
    %316 = vst [vmem:[#allocation2] sm:$0x7] %v315
    // Predicated region
    $region22: #{tpu_custom_call.1} parent=1 // pred_check
      _
    $region23: #{tpu_custom_call.1} parent=1 // pred_check_branch
      %318 = sbr.rel (0) target = $region25
    $region24: #{tpu_custom_call.1} parent=1 // pred_region
      %s320 = ssub.s32 64, 64
      %321 = vsyncadd [#allocation3], %s320
      %s323 = sshll.u32 [#allocation2], 4
      %s324 = int_to_ptr.vmem [resolvable:$true] %s323
      %326 = dma.vmem_to_hbm [thread:$0]  %s324, 64, %s5, [#allocation3]
    $region25: #{tpu_custom_call.1} parent=1 // pred_fallthru
      _
    // Predicated region
    $region26: #{tpu_custom_call.1} parent=1 // pred_check
      _
    $region27: #{tpu_custom_call.1} parent=1 // pred_check_branch
      %328 = sbr.rel (0) target = $region29
    $region28: #{tpu_custom_call.1} parent=1 // pred_region
      %329 = dma.done [#allocation3], 64
    $region29: #{tpu_custom_call.1} parent=1 // pred_fallthru
      _
    %330 = vsyncpa [#allocation3], 1

</llo_original>
